<compile_context>
chip_gen: v7x
topology: tpu7x:2x2x1
jax: 0.10.0
libtpu: 0.0.40
codegen_flags: <defaults>
</compile_context>

<pallas_src>
import jax
import jax.numpy as jnp
from jax.experimental import pallas as pl
from jax.experimental.pallas import tpu as pltpu

_LANES = 128      # vreg lane count (minor dim)
_SUBLANES = 8     # vreg sublane count (second-minor dim, 32-bit)


def _round_up(x, m):
    return ((x + m - 1) // m) * m


# ---------------------------------------------------------------------------
# Kernels
# ---------------------------------------------------------------------------
def _critic_kernel_packed(obs_ref, w1_ref, b1_ref, m2_ref, b2_ref, out_ref):
    """Lane-packed path (D divides 128, P = 128 // D obs rows per packed row).

    obs_ref: (R, 128)  lanes [c*D:(c+1)*D] of row r hold obs row r*P + c
    w1_ref:  (128,128) block-diagonal, P copies of W1 (in x out)
    b1_ref:  (1, 128)  b1 tiled P times, f32
    m2_ref:  (128,128) f32; m2[c*D + d, c] = w2[d], zero elsewhere
    b2_ref:  (1, 1)    f32
    out_ref: (R, P)    f32; out[r, c] = value of obs row r*P + c
    """
    x = obs_ref[...]
    # Layer 1 on the MXU, f32 accumulation (bf16 inputs pass straight through).
    h = jnp.dot(x, w1_ref[...], preferred_element_type=jnp.float32)
    h = h + b1_ref[...]
    # Softplus matching torch.nn.Softplus (beta=1, threshold=20).
    h = jnp.where(h > 20.0, h, jnp.log(1.0 + jnp.exp(jnp.minimum(h, 20.0))))
    # Layer 2 + per-chunk extraction fused into one MXU matmul: column c of m2
    # carries w2 over chunk c's D lanes, so y[:, c] is that chunk's value.
    y = jnp.dot(h, m2_ref[...], preferred_element_type=jnp.float32)
    p = out_ref.shape[-1]
    out_ref[...] = y[:, :p] + b2_ref[...]


def _critic_kernel_generic(obs_ref, w1_ref, b1_ref, w2_ref, b2_ref, out_ref):
    """Generic path (D >= 128 or D does not divide 128).

    obs_ref: (TB, D)   w1_ref: (D, D)   b1_ref: (1, D) f32
    w2_ref:  (1, D) f32   b2_ref: (1, 1) f32   out_ref: (TB, 1) f32
    """
    x = obs_ref[...]
    h = jnp.dot(x, w1_ref[...], preferred_element_type=jnp.float32)
    h = h + b1_ref[...]
    h = jnp.where(h > 20.0, h, jnp.log(1.0 + jnp.exp(jnp.minimum(h, 20.0))))
    # Second linear (D -> 1): VPU multiply + XLU lane reduction (exact f32),
    # keeping the degenerate N=1 contraction off the MXU.
    v = jnp.sum(h * w2_ref[...], axis=-1, keepdims=True)
    out_ref[...] = v + b2_ref[...]


# ---------------------------------------------------------------------------
# Wrappers
# ---------------------------------------------------------------------------
def _forward_packed(obs, w1, b1, w2, b2, B, D, block_rows):
    P = _LANES // D
    itemsize = jnp.dtype(obs.dtype).itemsize

    # Pad the batch so it reshapes exactly into (R, 128) with R % 8 == 0.
    row_quantum = P * _SUBLANES
    B_pad = _round_up(B, row_quantum)
    if B_pad != B:
        obs = jnp.pad(obs, ((0, B_pad - B), (0, 0)))
    R_total = B_pad // P
    obs_packed = obs.reshape(R_total, _LANES)   # contiguous reshape: free

    # Resident weights in the packed layout (tiny: <= ~3 * 64 KiB).
    w1_big = jnp.kron(jnp.eye(P, dtype=w1.dtype), w1)                 # (128,128)
    b1_big = jnp.tile(b1.astype(jnp.float32), (1, P))                 # (1,128)
    w2_col = w2.astype(jnp.float32).reshape(D, 1)
    m2 = jnp.kron(jnp.eye(P, dtype=jnp.float32), w2_col)              # (128, P)
    m2 = jnp.pad(m2, ((0, 0), (0, _LANES - P)))                       # (128,128)

    # ---- batch tile selection (packed rows) ----
    if block_rows is None:
        target_bytes = 2 * 1024 * 1024          # ~2 MiB streamed per grid step
        r_tile = max(_SUBLANES, target_bytes // (_LANES * itemsize))
    else:
        r_tile = max(_SUBLANES, int(block_rows) // P)
    r_tile = min(int(r_tile), 8192)             # keeps the VMEM budget v7x-safe
    r_tile = (r_tile // _SUBLANES) * _SUBLANES
    if R_total >= 2 * _SUBLANES:                # >= 2 grid steps -> v7x 2-TC split
        r_tile = min(r_tile, _round_up(pl.cdiv(R_total, 2), _SUBLANES))
    r_tile = min(r_tile, R_total)
    grid = (pl.cdiv(R_total, r_tile),)

    # ---- VMEM budget: real (lane-padded) footprints, capped for v7x ----
    weight_bytes = (int(w1_big.size) * w1_big.dtype.itemsize
                    + int(b1_big.size) * 4 + int(m2.size) * 4 + 4)
    tile_in = r_tile * _LANES * itemsize
    tile_out = r_tile * _LANES * 4              # (r_tile, P) lane-pads to 128 in VMEM
    scratch = 4 * r_tile * _LANES * 4           # f32 intermediates + slack
    vmem_limit = 2 * weight_bytes + 2 * (tile_in + tile_out) + scratch + (2 << 20)
    vmem_limit = int(min(48 * 1024 * 1024, max(16 * 1024 * 1024, vmem_limit)))

    cost = pl.CostEstimate(
        flops=int(2 * B * D * D + 4 * B * D),
        transcendentals=int(2 * B * D),
        bytes_accessed=int(B * D * itemsize + weight_bytes + B * 4),
    )

    out = pl.pallas_call(
        _critic_kernel_packed,
        out_shape=jax.ShapeDtypeStruct((R_total, P), jnp.float32),
        grid=grid,
        in_specs=[
            pl.BlockSpec((r_tile, _LANES), lambda i: (i, 0)),   # obs: streamed
            pl.BlockSpec((_LANES, _LANES), lambda i: (0, 0)),   # W1 block-diag: resident
            pl.BlockSpec((1, _LANES), lambda i: (0, 0)),        # b1: resident
            pl.BlockSpec((_LANES, _LANES), lambda i: (0, 0)),   # layer-2 matrix: resident
            pl.BlockSpec((1, 1), lambda i: (0, 0)),             # b2: resident
        ],
        out_specs=pl.BlockSpec((r_tile, P), lambda i: (i, 0)),
        compiler_params=pltpu.CompilerParams(
            dimension_semantics=("parallel",),
            vmem_limit_bytes=vmem_limit,
        ),
        cost_estimate=cost,
    )(obs_packed, w1_big, b1_big, m2, b2)

    # (R, P) row-major is exactly batch order: out[r, c] -> obs row r*P + c.
    return out.reshape(B_pad)[:B]


def _forward_generic(obs, w1, b1, w2, b2, B, D, block_rows):
    itemsize = jnp.dtype(obs.dtype).itemsize

    if block_rows is None:
        target_bytes = 2 * 1024 * 1024
        tb = max(_SUBLANES, target_bytes // (D * itemsize))
    else:
        tb = max(_SUBLANES, int(block_rows))
    tb = (int(tb) // _SUBLANES) * _SUBLANES
    if B >= 2 * _SUBLANES:
        tb = min(tb, _round_up(pl.cdiv(B, 2), _SUBLANES))
    tb = min(tb, B)
    grid = (pl.cdiv(B, tb),)

    b1_2d = b1.reshape(1, D).astype(jnp.float32)
    w2_2d = w2.reshape(1, D).astype(jnp.float32)

    weight_bytes = int(w1.size) * w1.dtype.itemsize + 2 * D * 4 + 4
    tile_in = tb * max(D, _LANES) * itemsize
    tile_out = tb * _LANES * 4
    scratch = 3 * tb * max(D, _LANES) * 4
    vmem_limit = 2 * weight_bytes + 2 * (tile_in + tile_out) + scratch + (2 << 20)
    vmem_limit = int(min(48 * 1024 * 1024, max(16 * 1024 * 1024, vmem_limit)))

    cost = pl.CostEstimate(
        flops=int(2 * B * D * D + 4 * B * D),
        transcendentals=int(2 * B * D),
        bytes_accessed=int(B * D * itemsize + weight_bytes + B * 4),
    )

    out = pl.pallas_call(
        _critic_kernel_generic,
        out_shape=jax.ShapeDtypeStruct((B, 1), jnp.float32),
        grid=grid,
        in_specs=[
            pl.BlockSpec((tb, D), lambda i: (i, 0)),     # obs: streamed
            pl.BlockSpec((D, D), lambda i: (0, 0)),      # W1: resident
            pl.BlockSpec((1, D), lambda i: (0, 0)),      # b1: resident
            pl.BlockSpec((1, D), lambda i: (0, 0)),      # w2 row: resident
            pl.BlockSpec((1, 1), lambda i: (0, 0)),      # b2: resident
        ],
        out_specs=pl.BlockSpec((tb, 1), lambda i: (i, 0)),
        compiler_params=pltpu.CompilerParams(
            dimension_semantics=("parallel",),
            vmem_limit_bytes=vmem_limit,
        ),
        cost_estimate=cost,
    )(obs, w1, b1_2d, w2_2d, b2)

    return jnp.squeeze(out, axis=-1)


def lto_mlp_critic_forward(obs, w1, b1, w2, b2, *, block_rows=None):
    """Forward pass of LTOMLPCritic.

    obs: (B, D).  w1: (D, D) in (in, out) layout (transpose of torch weight).
    b1: (D,).  w2: (D,) (the single row of the second Linear's weight).
    b2: scalar.  Returns (B,) float32 values (torch.squeeze(v_net(obs), -1)).
    """
    obs = jnp.asarray(obs)
    B, D = obs.shape
    w1 = jnp.asarray(w1).reshape(D, D)
    b1 = jnp.asarray(b1).reshape(1, D)
    w2 = jnp.asarray(w2).reshape(D)
    b2 = jnp.asarray(b2, dtype=jnp.float32).reshape(1, 1)

    if D <= _LANES and _LANES % D == 0:
        return _forward_packed(obs, w1, b1, w2, b2, B, D, block_rows)
    return _forward_generic(obs, w1, b1, w2, b2, B, D, block_rows)


# ---------------------------------------------------------------------------
# Parameter init (matches torch layer_init: orthogonal weights, zero bias)
# ---------------------------------------------------------------------------
def _orthogonal_init(key, shape, gain):
    rows, cols = shape
    n = max(rows, cols)
    a = jax.random.normal(key, (n, n), dtype=jnp.float32)
    q, r = jnp.linalg.qr(a)
    q = q * jnp.sign(jnp.diag(r))
    return gain * q[:rows, :cols]


def make_params(obs_dim, key):
    k1, k2 = jax.random.split(key)
    # torch Linear weight is (out, in); orthogonal_ acts on that shape.
    w1_torch = _orthogonal_init(k1, (obs_dim, obs_dim), jnp.sqrt(2.0))  # (D, D)
    w2_torch = _orthogonal_init(k2, (1, obs_dim), 1.0)                  # (1, D)
    w1 = jnp.transpose(w1_torch)                     # (in, out) for x @ W
    w2 = w2_torch.reshape(obs_dim)                   # (D,)
    b1 = jnp.zeros((obs_dim,), dtype=jnp.float32)    # bias_const = 0.0
    b2 = jnp.float32(0.0)
    return w1, b1, w2, b2


def reference_forward(obs, w1, b1, w2, b2):
    x = obs.astype(jnp.float32)
    h = x @ w1.astype(jnp.float32) + b1.astype(jnp.float32)[None, :]
    h = jnp.where(h > 20.0, h, jnp.log(1.0 + jnp.exp(jnp.minimum(h, 20.0))))
    v = jnp.sum(h * w2.astype(jnp.float32)[None, :], axis=-1) + jnp.float32(b2)
    return v


if __name__ == "__main__":
    key = jax.random.PRNGKey(0)
    k_p16, k_obs_a, k_obs_b, k_p256, k_obs_c = jax.random.split(key, 5)

    def snap(a):
        # Snap test data onto the bf16 grid so the comparison is insensitive
        # to whether the MXU contracts f32 in bf16 passes or full f32.
        return a.astype(jnp.bfloat16).astype(jnp.float32)

    def check(got, want, shape):
        assert got.shape == shape, (got.shape, shape)
        assert got.dtype == jnp.float32, got.dtype
        assert bool(jnp.all(jnp.isfinite(got)))
        # 2e-2 covers possible bf16-pass rounding of the (non-bf16-exact)
        # hidden activations in the layer-2 contraction; typical agreement is
        # far tighter (~1e-5).
        assert bool(jnp.allclose(got, want, atol=2e-2, rtol=2e-2)), float(
            jnp.max(jnp.abs(got - want)))

    # ---- lane-packed path: obs_dim = 16 (P = 8 obs rows per 128-lane row) ----
    D = 16
    w1, b1, w2, b2 = make_params(D, k_p16)
    w1, w2 = snap(w1), snap(w2)

    obs = snap(jax.random.normal(k_obs_a, (8, D), dtype=jnp.float32))
    out = jax.block_until_ready(lto_mlp_critic_forward(obs, w1, b1, w2, b2))
    check(out, reference_forward(obs, w1, b1, w2, b2), (8,))

    # Multi-tile grid + batch padding (1000 -> 1024 rows internally).
    obs2 = snap(jax.random.normal(k_obs_b, (1000, D), dtype=jnp.float32))
    out2 = jax.block_until_ready(lto_mlp_critic_forward(obs2, w1, b1, w2, b2))
    check(out2, reference_forward(obs2, w1, b1, w2, b2), (1000,))

    # Explicit small block_rows -> ragged last grid step (masked OOB rows).
    out3 = jax.block_until_ready(
        lto_mlp_critic_forward(obs2, w1, b1, w2, b2, block_rows=192))
    check(out3, reference_forward(obs2, w1, b1, w2, b2), (1000,))

    # ---- generic path: obs_dim = 256 (feature dim already lane-aligned) ----
    D2 = 256
    w1b, b1b, w2b, b2b = make_params(D2, k_p256)
    w1b, w2b = snap(w1b), snap(w2b)
    obs3 = snap(jax.random.normal(k_obs_c, (64, D2), dtype=jnp.float32))
    out4 = jax.block_until_ready(lto_mlp_critic_forward(obs3, w1b, b1b, w2b, b2b))
    check(out4, reference_forward(obs3, w1b, b1b, w2b, b2b), (64,))

    print("KERNEL_OK")
</pallas_src>

<mosaic_0001>
module attributes {stable_mosaic.version = 11 : i64} {
  func.func @_critic_kernel_packed(%arg0: i32, %arg1: memref<8x128xf32, #tpu.memory_space<vmem>>, %arg2: memref<128x128xf32, #tpu.memory_space<vmem>>, %arg3: memref<1x128xf32, #tpu.memory_space<vmem>>, %arg4: memref<128x128xf32, #tpu.memory_space<vmem>>, %arg5: memref<1x1xf32, #tpu.memory_space<vmem>>, %arg6: memref<8x8xf32, #tpu.memory_space<vmem>>) attributes {dimension_semantics = [#tpu.dimension_semantics<parallel>], iteration_bounds = array<i64: 1>, scalar_prefetch = 0 : i64, scratch_operands = 0 : i64, tpu.core_type = #tpu.core_type<tc>, window_params = [{transform_indices = @transform_0, window_bounds = array<i64: 8, 128>}, {pipeline_mode = #tpu.pipeline_mode<synchronous>, transform_indices = @transform_1, window_bounds = array<i64: 128, 128>}, {pipeline_mode = #tpu.pipeline_mode<synchronous>, transform_indices = @transform_2, window_bounds = array<i64: 1, 128>}, {pipeline_mode = #tpu.pipeline_mode<synchronous>, transform_indices = @transform_3, window_bounds = array<i64: 128, 128>}, {pipeline_mode = #tpu.pipeline_mode<synchronous>, transform_indices = @transform_4, window_bounds = array<i64: 1, 1>}, {transform_indices = @transform_5, window_bounds = array<i64: 8, 8>}]} {
    %c0 = arith.constant 0 : index
    %c0_0 = arith.constant 0 : index
    %0 = vector.load %arg1[%c0, %c0_0] : memref<8x128xf32, #tpu.memory_space<vmem>>, vector<8x128xf32>
    %c0_1 = arith.constant 0 : index
    %c0_2 = arith.constant 0 : index
    %1 = vector.load %arg2[%c0_1, %c0_2] : memref<128x128xf32, #tpu.memory_space<vmem>>, vector<128x128xf32>
    %cst = arith.constant dense<0.000000e+00> : vector<8x128xf32>
    %2 = tpu.matmul %0, %1, %cst {dimension_numbers = #tpu.dot_dimension_numbers<[1], [0], [0], [1], [0, 0, 1, 1], [], []>} : vector<8x128xf32>, vector<128x128xf32>, vector<8x128xf32> -> vector<8x128xf32>
    %c0_3 = arith.constant 0 : index
    %c0_4 = arith.constant 0 : index
    %3 = vector.load %arg3[%c0_3, %c0_4] : memref<1x128xf32, #tpu.memory_space<vmem>>, vector<1x128xf32>
    %4 = vector.broadcast %3 : vector<1x128xf32> to vector<8x128xf32>
    %5 = arith.addf %2, %4 : vector<8x128xf32>
    %cst_5 = arith.constant 2.000000e+01 : f32
    %6 = vector.broadcast %cst_5 : f32 to vector<8x128xf32>
    %7 = arith.cmpf ogt, %5, %6 : vector<8x128xf32>
    %cst_6 = arith.constant 2.000000e+01 : f32
    %8 = vector.broadcast %cst_6 : f32 to vector<8x128xf32>
    %9 = arith.minimumf %5, %8 : vector<8x128xf32>
    %10 = math.exp %9 : vector<8x128xf32>
    %cst_7 = arith.constant 1.000000e+00 : f32
    %11 = vector.broadcast %cst_7 : f32 to vector<8x128xf32>
    %12 = arith.addf %11, %10 : vector<8x128xf32>
    %13 = math.log %12 : vector<8x128xf32>
    %14 = arith.select %7, %5, %13 : vector<8x128xi1>, vector<8x128xf32>
    %c0_8 = arith.constant 0 : index
    %c0_9 = arith.constant 0 : index
    %15 = vector.load %arg4[%c0_8, %c0_9] : memref<128x128xf32, #tpu.memory_space<vmem>>, vector<128x128xf32>
    %cst_10 = arith.constant dense<0.000000e+00> : vector<8x128xf32>
    %16 = tpu.matmul %14, %15, %cst_10 {dimension_numbers = #tpu.dot_dimension_numbers<[1], [0], [0], [1], [0, 0, 1, 1], [], []>} : vector<8x128xf32>, vector<128x128xf32>, vector<8x128xf32> -> vector<8x128xf32>
    %17 = vector.extract_strided_slice %16 {offsets = [0, 0], sizes = [8, 8], strides = [1, 1]} : vector<8x128xf32> to vector<8x8xf32>
    %c0_11 = arith.constant 0 : index
    %c0_12 = arith.constant 0 : index
    %18 = vector.load %arg5[%c0_11, %c0_12] : memref<1x1xf32, #tpu.memory_space<vmem>>, vector<1x1xf32>
    %19 = vector.broadcast %18 : vector<1x1xf32> to vector<8x8xf32>
    %20 = arith.addf %17, %19 : vector<8x8xf32>
    %c0_13 = arith.constant 0 : index
    %c0_14 = arith.constant 0 : index
    %21 = vector.load %arg6[%c0_13, %c0_14] : memref<8x8xf32, #tpu.memory_space<vmem>>, vector<8x8xf32>
    tpu.vector_store %arg6[%c0_13, %c0_14], %20 {strides = array<i32>} : memref<8x8xf32, #tpu.memory_space<vmem>>, vector<8x8xf32>,
    return
  }
  func.func @transform_0(%arg0: i32) -> (i32, i32) {
    %c0_i32 = arith.constant 0 : i32
    %c0_i32_0 = arith.constant 0 : i32
    return %arg0, %c0_i32 : i32, i32
  }
  func.func @transform_1(%arg0: i32) -> (i32, i32) {
    %c0_i32 = arith.constant 0 : i32
    %c0_i32_0 = arith.constant 0 : i32
    %c0_i32_1 = arith.constant 0 : i32
    return %c0_i32, %c0_i32_0 : i32, i32
  }
  func.func @transform_2(%arg0: i32) -> (i32, i32) {
    %c0_i32 = arith.constant 0 : i32
    %c0_i32_0 = arith.constant 0 : i32
    %c0_i32_1 = arith.constant 0 : i32
    return %c0_i32, %c0_i32_0 : i32, i32
  }
  func.func @transform_3(%arg0: i32) -> (i32, i32) {
    %c0_i32 = arith.constant 0 : i32
    %c0_i32_0 = arith.constant 0 : i32
    %c0_i32_1 = arith.constant 0 : i32
    return %c0_i32, %c0_i32_0 : i32, i32
  }
  func.func @transform_4(%arg0: i32) -> (i32, i32) {
    %c0_i32 = arith.constant 0 : i32
    %c0_i32_0 = arith.constant 0 : i32
    %c0_i32_1 = arith.constant 0 : i32
    return %c0_i32, %c0_i32_0 : i32, i32
  }
  func.func @transform_5(%arg0: i32) -> (i32, i32) {
    %c0_i32 = arith.constant 0 : i32
    %c0_i32_0 = arith.constant 0 : i32
    return %arg0, %c0_i32 : i32, i32
  }
}

</mosaic_0001>

<llo_original>
// kernel: tpu_custom_call.1
$region0: #{tpu_custom_call.1}
  #allocation0 [shape = 'u32[]', space=smem, size = 0x4, offset = 0x4, fixed_abs, tag = 'smem constant byte address 0x4 - core index']
  #allocation1 [shape = 'u32[144,128]{1,0:T(1,128)}', space=vmem, size = 0x12000, scoped, tag = 'internal scratch']
  #allocation2 [shape = 'f32[1,1]{1,0:T(1,128)S(1)}', space=vmem, size = 0x200, scoped, tag = 'scoped memory for tpu_custom_call.1']
  %s0 = inlined_call_operand.hbm [shape: f32[8,128], index: 0, kind: input, shape index: {}]
  %s1 = inlined_call_operand.hbm [shape: f32[128,128], index: 1, kind: input, shape index: {}]
  %s2 = inlined_call_operand.vmem [shape: f32[1,128], index: 2, kind: input, shape index: {}]
  %s3 = inlined_call_operand.hbm [shape: f32[128,128], index: 3, kind: input, shape index: {}]
  %s4 = inlined_call_operand.<no memory space> [shape: f32[1,1], index: 4, kind: input, shape index: {}]
  %s5 = inlined_call_operand.hbm [shape: f32[8,8], index: 5, kind: output, shape index: {}]
  %s6 = sld [smem:[#allocation0]]
  $region42: #{tpu_custom_call.1} parent=0
    _
  %s8 = ssub.s32 1, %s6
  %s9 = scalar_select 0, %s8, %s6
  %v10 = vstv %s4
  %11 = vst [vmem:[#allocation2] sm:$0x1] %v10
  $region1: #{tpu_custom_call.1} parent=0
    #allocation3 [shape = 'u8[4096]{0}', space=vmem, size = 0x1000, scoped, tag = 'input window, operand 0, single buffered']
    #allocation4 [shape = 's32[1]{0}', space=sflag, size = 0x4, scoped, tag = 'scoped memory for tpu_custom_call.1']
    #allocation5 [shape = 's32[1]{0}', space=sflag, size = 0x4, scoped, tag = 'scoped memory for tpu_custom_call.1']
    #allocation6 [shape = 'u8[65536]{0}', space=vmem, size = 0x10000, scoped, tag = 'input window, operand 1, single buffered']
    #allocation7 [shape = 's32[1]{0}', space=sflag, size = 0x4, scoped, tag = 'scoped memory for tpu_custom_call.1']
    #allocation8 [shape = 'u8[65536]{0}', space=vmem, size = 0x10000, scoped, tag = 'input window, operand 3, single buffered']
    #allocation9 [shape = 'u8[4096]{0}', space=vmem, size = 0x1000, scoped, tag = 'output window, operand 0, single buffered']
    %12 = vsyncpa [#allocation4], 0
    %13 = vsyncpa [#allocation7], 0
    %14 = vsyncpa [#allocation5], 0
    // Predicated region
    $region2: #{tpu_custom_call.1} parent=1 // pred_check
      _
    $region3: #{tpu_custom_call.1} parent=1 // pred_check_branch
      %16 = sbr.rel (0) target = $region5
    $region4: #{tpu_custom_call.1} parent=1 // pred_region
      %s18 = ssub.s32 128, 128
      %19 = vsyncadd [#allocation4], %s18
      %s21 = sshll.u32 [#allocation3], 4
      %s22 = int_to_ptr.vmem [resolvable:$true] %s21
      %24 = dma.hbm_to_vmem [thread:$0]  %s0, 128, %s22, [#allocation4]
    $region5: #{tpu_custom_call.1} parent=1 // pred_fallthru
      _
    // Predicated region
    $region6: #{tpu_custom_call.1} parent=1 // pred_check
      _
    $region7: #{tpu_custom_call.1} parent=1 // pred_check_branch
      %26 = sbr.rel (0) target = $region9
    $region8: #{tpu_custom_call.1} parent=1 // pred_region
      %s28 = ssub.s32 2048, 2048
      %29 = vsyncadd [#allocation7], %s28
      %s30 = sshll.u32 [#allocation6], 4
      %s31 = int_to_ptr.vmem [resolvable:$true] %s30
      %36 = dma.hbm_to_vmem [thread:$0]  %s1, 2048, %s31, [#allocation7], 128, 128, 8
    $region9: #{tpu_custom_call.1} parent=1 // pred_fallthru
      _
    // Predicated region
    $region10: #{tpu_custom_call.1} parent=1 // pred_check
      _
    $region11: #{tpu_custom_call.1} parent=1 // pred_check_branch
      %38 = sbr.rel (0) target = $region13
    $region12: #{tpu_custom_call.1} parent=1 // pred_region
      _
    $region13: #{tpu_custom_call.1} parent=1 // pred_fallthru
      _
    // Predicated region
    $region14: #{tpu_custom_call.1} parent=1 // pred_check
      _
    $region15: #{tpu_custom_call.1} parent=1 // pred_check_branch
      %40 = sbr.rel (0) target = $region17
    $region16: #{tpu_custom_call.1} parent=1 // pred_region
      %s42 = ssub.s32 2048, 2048
      %43 = vsyncadd [#allocation7], %s42
      %s44 = sshll.u32 [#allocation8], 4
      %s45 = int_to_ptr.vmem [resolvable:$true] %s44
      %50 = dma.hbm_to_vmem [thread:$0]  %s3, 2048, %s45, [#allocation7], 128, 128, 8
    $region17: #{tpu_custom_call.1} parent=1 // pred_fallthru
      _
    // Predicated region
    $region18: #{tpu_custom_call.1} parent=1 // pred_check
      _
    $region19: #{tpu_custom_call.1} parent=1 // pred_check_branch
      %52 = sbr.rel (0) target = $region21
    $region20: #{tpu_custom_call.1} parent=1 // pred_region
      _
    $region21: #{tpu_custom_call.1} parent=1 // pred_fallthru
      _
    // Predicated region
    $region22: #{tpu_custom_call.1} parent=1 // pred_check
      _
    $region23: #{tpu_custom_call.1} parent=1 // pred_check_branch
      %54 = sbr.rel (0) target = $region25
    $region24: #{tpu_custom_call.1} parent=1 // pred_region
      %55 = dma.done [#allocation4], 128
    $region25: #{tpu_custom_call.1} parent=1 // pred_fallthru
      _
    // Predicated region
    $region26: #{tpu_custom_call.1} parent=1 // pred_check
      _
    $region27: #{tpu_custom_call.1} parent=1 // pred_check_branch
      %57 = sbr.rel (0) target = $region29
    $region28: #{tpu_custom_call.1} parent=1 // pred_region
      %58 = dma.done [#allocation7], 2048
    $region29: #{tpu_custom_call.1} parent=1 // pred_fallthru
      _
    // Predicated region
    $region30: #{tpu_custom_call.1} parent=1 // pred_check
      _
    $region31: #{tpu_custom_call.1} parent=1 // pred_check_branch
      %60 = sbr.rel (0) target = $region33
    $region32: #{tpu_custom_call.1} parent=1 // pred_region
      %61 = dma.done [#allocation7], 2048
    $region33: #{tpu_custom_call.1} parent=1 // pred_fallthru
      _
    %v62 = vld [vmem:[#allocation3] sm:$0xff]
    %v63 = vld [vmem:[#allocation6] sm:$0xff]
    %v64 = vld [vmem:[#allocation6 + $0x8] sm:$0xff]
    %v65 = vld [vmem:[#allocation6 + $0x10] sm:$0xff]
    %v66 = vld [vmem:[#allocation6 + $0x18] sm:$0xff]
    %v67 = vld [vmem:[#allocation6 + $0x20] sm:$0xff]
    %v68 = vld [vmem:[#allocation6 + $0x28] sm:$0xff]
    %v69 = vld [vmem:[#allocation6 + $0x30] sm:$0xff]
    %v70 = vld [vmem:[#allocation6 + $0x38] sm:$0xff]
    %v71 = vld [vmem:[#allocation6 + $0x40] sm:$0xff]
    %v72 = vld [vmem:[#allocation6 + $0x48] sm:$0xff]
    %v73 = vld [vmem:[#allocation6 + $0x50] sm:$0xff]
    %v74 = vld [vmem:[#allocation6 + $0x58] sm:$0xff]
    %v75 = vld [vmem:[#allocation6 + $0x60] sm:$0xff]
    %v76 = vld [vmem:[#allocation6 + $0x68] sm:$0xff]
    %v77 = vld [vmem:[#allocation6 + $0x70] sm:$0xff]
    %v78 = vld [vmem:[#allocation6 + $0x78] sm:$0xff]
    %v79 = vld [vmem:[%s2] sm:$0x1]
    %v81 = vlaneseq
    %v82 = vshrl.u32 %v81, 7
    %v83 = vsub.s32 0, %v82
    %v84 = vrot.slane %v79, %v83
    %86 = vmatprep.subr.mxu0 0.0
    %87 = vmatpush1.msra.mxu0 %v63
    %88 = vmatprep.subr.mxu0 0.0
    %89 = vmatpush1.msra.mxu0 %v64
    %90 = vmatprep.subr.mxu0 0.0
    %91 = vmatpush1.msra.mxu0 %v65
    %92 = vmatprep.subr.mxu0 0.0
    %93 = vmatpush1.msra.mxu0 %v66
    %94 = vmatprep.subr.mxu0 0.0
    %95 = vmatpush1.msra.mxu0 %v67
    %96 = vmatprep.subr.mxu0 0.0
    %97 = vmatpush1.msra.mxu0 %v68
    %98 = vmatprep.subr.mxu0 0.0
    %99 = vmatpush1.msra.mxu0 %v69
    %100 = vmatprep.subr.mxu0 0.0
    %101 = vmatpush1.msra.mxu0 %v70
    %102 = vmatprep.subr.mxu0 0.0
    %103 = vmatpush1.msra.mxu0 %v71
    %104 = vmatprep.subr.mxu0 0.0
    %105 = vmatpush1.msra.mxu0 %v72
    %106 = vmatprep.subr.mxu0 0.0
    %107 = vmatpush1.msra.mxu0 %v73
    %108 = vmatprep.subr.mxu0 0.0
    %109 = vmatpush1.msra.mxu0 %v74
    %110 = vmatprep.subr.mxu0 0.0
    %111 = vmatpush1.msra.mxu0 %v75
    %112 = vmatprep.subr.mxu0 0.0
    %113 = vmatpush1.msra.mxu0 %v76
    %114 = vmatprep.subr.mxu0 0.0
    %115 = vmatpush1.msra.mxu0 %v77
    %116 = vmatprep.subr.mxu0 0.0
    %117 = vmatpush1.msra.mxu0 %v78
    %118 = vmatprep.subr.mxu0 0.0
    %119 = vmatpush1.msra.mxu0 0.0
    %120 = vmatprep.subr.mxu0 0.0
    %121 = vmatpush1.msra.mxu0 0.0
    %122 = vmatprep.subr.mxu0 0.0
    %123 = vmatpush1.msra.mxu0 0.0
    %124 = vmatprep.subr.mxu0 0.0
    %125 = vmatpush1.msra.mxu0 0.0
    %126 = vmatprep.subr.mxu0 0.0
    %127 = vmatpush1.msra.mxu0 0.0
    %128 = vmatprep.subr.mxu0 0.0
    %129 = vmatpush1.msra.mxu0 0.0
    %130 = vmatprep.subr.mxu0 0.0
    %131 = vmatpush1.msra.mxu0 0.0
    %132 = vmatprep.subr.mxu0 0.0
    %133 = vmatpush1.msra.mxu0 0.0
    %134 = vmatprep.subr.mxu0 0.0
    %135 = vmatpush1.msra.mxu0 0.0
    %136 = vmatprep.subr.mxu0 0.0
    %137 = vmatpush1.msra.mxu0 0.0
    %138 = vmatprep.subr.mxu0 0.0
    %139 = vmatpush1.msra.mxu0 0.0
    %140 = vmatprep.subr.mxu0 0.0
    %141 = vmatpush1.msra.mxu0 0.0
    %142 = vmatprep.subr.mxu0 0.0
    %143 = vmatpush1.msra.mxu0 0.0
    %144 = vmatprep.subr.mxu0 0.0
    %145 = vmatpush1.msra.mxu0 0.0
    %146 = vmatprep.subr.mxu0 0.0
    %147 = vmatpush1.msra.mxu0 0.0
    %148 = vmatprep.subr.mxu0 0.0
    %149 = vmatpush1.msra.mxu0 0.0
    %150 = vmatprep.mubr.f32.mxu0 0.0
    %151 = vmatmul.mubr.f32.gmra.mrb[0].mxu0 %v62
    %v152 = vpop.f32.mrb[0].mxu0
    %v153 = vadd.f32 %v84, %v152
    %v154 = vpop.f32.mrb[0].mxu0
    %155 = vdwg.mxu0
    %vm156 = vcmp.gt.f32.partialorder %v153, 20.0
    %v157 = vmin.f32 %v153, 20.0
    %v158 = vmul.f32 %v157, 1.442695
    %v159 = vpow.pop %v158
    %v160 = vadd.f32 %v159, 1.0
    %v161 = vlog2.pop %v160
    %v162 = vmul.f32 %v161, 0.6931472
    %v163 = vsel %vm156, %v153, %v162
    %v164 = vld [vmem:[#allocation8] sm:$0xff]
    %v165 = vld [vmem:[#allocation8 + $0x8] sm:$0xff]
    %v166 = vld [vmem:[#allocation8 + $0x10] sm:$0xff]
    %v167 = vld [vmem:[#allocation8 + $0x18] sm:$0xff]
    %v168 = vld [vmem:[#allocation8 + $0x20] sm:$0xff]
    %v169 = vld [vmem:[#allocation8 + $0x28] sm:$0xff]
    %v170 = vld [vmem:[#allocation8 + $0x30] sm:$0xff]
    %v171 = vld [vmem:[#allocation8 + $0x38] sm:$0xff]
    %v172 = vld [vmem:[#allocation8 + $0x40] sm:$0xff]
    %v173 = vld [vmem:[#allocation8 + $0x48] sm:$0xff]
    %v174 = vld [vmem:[#allocation8 + $0x50] sm:$0xff]
    %v175 = vld [vmem:[#allocation8 + $0x58] sm:$0xff]
    %v176 = vld [vmem:[#allocation8 + $0x60] sm:$0xff]
    %v177 = vld [vmem:[#allocation8 + $0x68] sm:$0xff]
    %v178 = vld [vmem:[#allocation8 + $0x70] sm:$0xff]
    %v179 = vld [vmem:[#allocation8 + $0x78] sm:$0xff]
    %180 = vmatprep.subr.mxu0 0.0
    %181 = vmatpush1.msra.mxu0 %v164
    %182 = vmatprep.subr.mxu0 0.0
    %183 = vmatpush1.msra.mxu0 %v165
    %184 = vmatprep.subr.mxu0 0.0
    %185 = vmatpush1.msra.mxu0 %v166
    %186 = vmatprep.subr.mxu0 0.0
    %187 = vmatpush1.msra.mxu0 %v167
    %188 = vmatprep.subr.mxu0 0.0
    %189 = vmatpush1.msra.mxu0 %v168
    %190 = vmatprep.subr.mxu0 0.0
    %191 = vmatpush1.msra.mxu0 %v169
    %192 = vmatprep.subr.mxu0 0.0
    %193 = vmatpush1.msra.mxu0 %v170
    %194 = vmatprep.subr.mxu0 0.0
    %195 = vmatpush1.msra.mxu0 %v171
    %196 = vmatprep.subr.mxu0 0.0
    %197 = vmatpush1.msra.mxu0 %v172
    %198 = vmatprep.subr.mxu0 0.0
    %199 = vmatpush1.msra.mxu0 %v173
    %200 = vmatprep.subr.mxu0 0.0
    %201 = vmatpush1.msra.mxu0 %v174
    %202 = vmatprep.subr.mxu0 0.0
    %203 = vmatpush1.msra.mxu0 %v175
    %204 = vmatprep.subr.mxu0 0.0
    %205 = vmatpush1.msra.mxu0 %v176
    %206 = vmatprep.subr.mxu0 0.0
    %207 = vmatpush1.msra.mxu0 %v177
    %208 = vmatprep.subr.mxu0 0.0
    %209 = vmatpush1.msra.mxu0 %v178
    %210 = vmatprep.subr.mxu0 0.0
    %211 = vmatpush1.msra.mxu0 %v179
    %212 = vmatprep.subr.mxu0 0.0
    %213 = vmatpush1.msra.mxu0 0.0
    %214 = vmatprep.subr.mxu0 0.0
    %215 = vmatpush1.msra.mxu0 0.0
    %216 = vmatprep.subr.mxu0 0.0
    %217 = vmatpush1.msra.mxu0 0.0
    %218 = vmatprep.subr.mxu0 0.0
    %219 = vmatpush1.msra.mxu0 0.0
    %220 = vmatprep.subr.mxu0 0.0
    %221 = vmatpush1.msra.mxu0 0.0
    %222 = vmatprep.subr.mxu0 0.0
    %223 = vmatpush1.msra.mxu0 0.0
    %224 = vmatprep.subr.mxu0 0.0
    %225 = vmatpush1.msra.mxu0 0.0
    %226 = vmatprep.subr.mxu0 0.0
    %227 = vmatpush1.msra.mxu0 0.0
    %228 = vmatprep.subr.mxu0 0.0
    %229 = vmatpush1.msra.mxu0 0.0
    %230 = vmatprep.subr.mxu0 0.0
    %231 = vmatpush1.msra.mxu0 0.0
    %232 = vmatprep.subr.mxu0 0.0
    %233 = vmatpush1.msra.mxu0 0.0
    %234 = vmatprep.subr.mxu0 0.0
    %235 = vmatpush1.msra.mxu0 0.0
    %236 = vmatprep.subr.mxu0 0.0
    %237 = vmatpush1.msra.mxu0 0.0
    %238 = vmatprep.subr.mxu0 0.0
    %239 = vmatpush1.msra.mxu0 0.0
    %240 = vmatprep.subr.mxu0 0.0
    %241 = vmatpush1.msra.mxu0 0.0
    %242 = vmatprep.subr.mxu0 0.0
    %243 = vmatpush1.msra.mxu0 0.0
    %244 = vmatprep.mubr.f32.mxu0 0.0
    %245 = vmatmul.mubr.f32.gmra.mrb[0].mxu0 %v163
    %v246 = vpop.f32.mrb[0].mxu0
    %v247 = vadd.f32 0.0, %v246
    %v248 = vpop.f32.mrb[0].mxu0
    %249 = vdwg.mxu0
    %v250 = vld [vmem:[#allocation2] sm:$0x1]
    %v252 = vlaneseq
    %v253 = vshrl.u32 %v252, 7
    %v254 = vsub.s32 0, %v253
    %v255 = vrot.slane %v250, %v254
    %256 = vset.pattern.permute.xlu0 0
    %257 = vperm.xlu0 %256, %v255
    %v258 = vpop.permute.xlu0 %257
    %v260 = vadd.f32 %v247, %v258
    %vm261 = vcmask 64512
    %262 = vst.msk [vmem:[#allocation9] sm:$0xff] %vm261, %v260
    // Predicated region
    $region34: #{tpu_custom_call.1} parent=1 // pred_check
      _
    $region35: #{tpu_custom_call.1} parent=1 // pred_check_branch
      %264 = sbr.rel (0) target = $region37
    $region36: #{tpu_custom_call.1} parent=1 // pred_region
      %s266 = ssub.s32 128, 128
      %267 = vsyncadd [#allocation5], %s266
      %s269 = sshll.u32 [#allocation9], 4
      %s270 = int_to_ptr.vmem [resolvable:$true] %s269
      %272 = dma.vmem_to_hbm [thread:$0]  %s270, 128, %s5, [#allocation5]
    $region37: #{tpu_custom_call.1} parent=1 // pred_fallthru
      _
    // Predicated region
    $region38: #{tpu_custom_call.1} parent=1 // pred_check
      _
    $region39: #{tpu_custom_call.1} parent=1 // pred_check_branch
      %274 = sbr.rel (0) target = $region41
    $region40: #{tpu_custom_call.1} parent=1 // pred_region
      %275 = dma.done [#allocation5], 128
    $region41: #{tpu_custom_call.1} parent=1 // pred_fallthru
      _
    %276 = vsyncpa [#allocation4], 1
    %277 = vsyncpa [#allocation7], 1
    %278 = vsyncpa [#allocation5], 1

</llo_original>
